<compile_context>
chip_gen: v7x
topology: tpu7x:2x2x1
jax: 0.10.0
libtpu: 0.0.40
codegen_flags: <defaults>
</compile_context>

<pallas_src>
import jax
import jax.numpy as jnp
from jax.experimental import pallas as pl
from jax.experimental.pallas import tpu as pltpu

_LANE = 128                      # vreg lane width
_MAX_COLS = 16384                # cap on lane-axis width of the 2D slab
_TARGET_BLOCK_BYTES = 4 << 20    # ~4 MiB/block (near the measured roofline knee)
_VMEM_LIMIT_BYTES = 32 << 20     # 4 MiB x (in+out) x 2 buffers = 16 MiB + headroom;
                                 # <= v7x's 64 MiB physical and the 32 MiB scoped default.


def _sublanes(dtype):
    """Packed sublane count per vreg for this dtype (8 for 4B, 16 for 2B, 32 for 1B)."""
    return {4: 8, 2: 16, 1: 32}.get(jnp.dtype(dtype).itemsize, 8)


def _sigmoid_kernel(x_ref, o_ref):
    # Compute in f32: exact sigmoid, and safe on v5e (no bf16 VPU/EUP).
    # TODO(synk): bf16 inputs on v6e/v7x could skip this upcast (bf16 VPU/EUP
    #             exist there) to halve vreg pressure; kept f32 for accuracy.
    x = x_ref[...].astype(jnp.float32)
    # Exact sigmoid: exp runs on the EUP; exact divide (no approx reciprocal)
    # so the output matches jax.nn.sigmoid within f32 roundoff. The kernel is
    # HBM-bound, so the extra ALU work hides under the DMA.
    o_ref[...] = (1.0 / (1.0 + jnp.exp(-x))).astype(o_ref.dtype)


def _divisors(n):
    small, large = [], []
    i = 1
    while i * i <= n:
        if n % i == 0:
            small.append(i)
            if i != n // i:
                large.append(n // i)
        i += 1
    return small + large[::-1]


def _choose_2d(total, sub):
    """Pick (rows, cols): cols a multiple of 128 dividing `total`, as wide as
    possible (<= _MAX_COLS), with rows a multiple of the packed sublane count
    so every block is fully (sub, 128)-tileable. `total` is a multiple of
    sub*128, so cols=128 is always valid."""
    best = _LANE
    cols = _LANE
    cap = min(total, _MAX_COLS)
    while cols <= cap:
        if total % cols == 0 and (total // cols) % sub == 0:
            best = cols
        cols += _LANE
    return total // best, best


def _choose_tile_rows(rows, cols, itemsize, sub):
    """Largest multiple-of-`sub` divisor of `rows` whose block fits the byte
    budget, preferring an EVEN grid-step count (ideally >= 4) so v7x's two
    TensorCores both stream a balanced, pipelined share."""
    if rows <= sub:
        return rows
    cands = [d for d in _divisors(rows) if d % sub == 0]
    if not cands:
        return rows  # legal fallback: block dim equals the full array dim
    row_bytes = cols * itemsize
    budget_rows = max(sub, _TARGET_BLOCK_BYTES // row_bytes)
    pool = [d for d in cands if d <= budget_rows] or [min(cands)]

    def steps(d):
        return rows // d

    even4 = [d for d in pool if steps(d) % 2 == 0 and steps(d) >= 4]
    if even4:
        return max(even4)
    even2 = [d for d in pool if steps(d) % 2 == 0]
    if even2:
        return max(even2)
    # No even-step divisor within budget: shrink only if the array is big
    # enough to amortize the extra grid steps (~0.35 us each).
    if rows * row_bytes >= (1 << 20):
        even_any = [d for d in cands if steps(d) % 2 == 0 and d < max(pool)]
        if even_any:
            return max(even_any)
    return max(pool)


def _run_kernel_2d(flat_aligned, dtype, itemsize, sub):
    """Run the sigmoid kernel over a flat array whose length is a multiple of sub*128."""
    total = flat_aligned.shape[0]
    rows, cols = _choose_2d(total, sub)
    x2d = flat_aligned.reshape(rows, cols)
    tile_r = _choose_tile_rows(rows, cols, itemsize, sub)
    grid = (rows // tile_r,)

    # NOTE: input_output_aliases={0: 0} would let the output reuse the input
    # HBM buffer, but only pays off when the caller donates the input at a
    # jit boundary; omitted here to keep the wrapper side-effect free.
    out2d = pl.pallas_call(
        _sigmoid_kernel,
        out_shape=jax.ShapeDtypeStruct((rows, cols), dtype),
        grid_spec=pltpu.PrefetchScalarGridSpec(
            num_scalar_prefetch=0,
            grid=grid,
            in_specs=[pl.BlockSpec((tile_r, cols), lambda i: (i, 0))],
            out_specs=pl.BlockSpec((tile_r, cols), lambda i: (i, 0)),
        ),
        compiler_params=pltpu.CompilerParams(
            dimension_semantics=("parallel",),
            vmem_limit_bytes=_VMEM_LIMIT_BYTES,
        ),
        cost_estimate=pl.CostEstimate(
            flops=3 * total,            # neg, add, divide (elementwise)
            transcendentals=total,      # one exp per element
            bytes_accessed=2 * total * itemsize,
        ),
    )(x2d)
    return out2d.reshape(total)


def sigmoid_pallas(x):
    """Elementwise sigmoid over an arbitrary-shape tensor via a Pallas TPU kernel."""
    orig_shape = x.shape
    orig_dtype = x.dtype
    numel = int(x.size)
    if numel == 0:
        return x
    itemsize = jnp.dtype(orig_dtype).itemsize
    sub = _sublanes(orig_dtype)
    align = sub * _LANE

    flat = x.reshape(numel)
    aligned = numel - (numel % align)

    if aligned == 0:
        # Smaller than one (sublane, lane) tile: not worth a kernel launch.
        # TODO(synk): could be served by a single ragged 1-D block if required.
        return jax.nn.sigmoid(flat).reshape(orig_shape)

    if aligned == numel:
        # Aligned fast path: no pad, no slice -- 2-pass HBM roofline.
        return _run_kernel_2d(flat, orig_dtype, itemsize, sub).reshape(orig_shape)

    # Ragged tail (< sub*128 elements): kernel on the aligned prefix, plain
    # elementwise math on the tiny tail. Avoids a full-tensor pad + post-slice.
    out_head = _run_kernel_2d(flat[:aligned], orig_dtype, itemsize, sub)
    out_tail = jax.nn.sigmoid(flat[aligned:]).astype(orig_dtype)
    return jnp.concatenate([out_head, out_tail]).reshape(orig_shape)


if __name__ == "__main__":
    key = jax.random.PRNGKey(0)
    # Small NCHW input consistent with the module's forward (any shape works).
    x = jax.random.normal(key, (2, 4, 16, 16), dtype=jnp.float32)

    y = jax.block_until_ready(sigmoid_pallas(x))

    ref = jax.nn.sigmoid(x)
    assert y.shape == x.shape and y.dtype == x.dtype
    err = float(jnp.max(jnp.abs(y - ref)))
    assert err < 1e-5, err

    # Also exercise the ragged-tail path (element count not a multiple of 1024).
    x2 = jax.random.normal(jax.random.PRNGKey(1), (3, 5, 7, 11), dtype=jnp.float32)
    y2 = jax.block_until_ready(sigmoid_pallas(x2))
    err2 = float(jnp.max(jnp.abs(y2 - jax.nn.sigmoid(x2))))
    assert y2.shape == x2.shape and err2 < 1e-5, err2

    print("KERNEL_OK")
</pallas_src>

<mosaic_0001>
module attributes {stable_mosaic.version = 11 : i64} {
  func.func @_sigmoid_kernel(%arg0: i32, %arg1: memref<8x256xf32, #tpu.memory_space<vmem>>, %arg2: memref<8x256xf32, #tpu.memory_space<vmem>>) attributes {dimension_semantics = [#tpu.dimension_semantics<parallel>], iteration_bounds = array<i64: 1>, scalar_prefetch = 0 : i64, scratch_operands = 0 : i64, tpu.core_type = #tpu.core_type<tc>, window_params = [{transform_indices = @transform_0, window_bounds = array<i64: 8, 256>}, {transform_indices = @transform_1, window_bounds = array<i64: 8, 256>}]} {
    %c0 = arith.constant 0 : index
    %c0_0 = arith.constant 0 : index
    %0 = vector.load %arg1[%c0, %c0_0] : memref<8x256xf32, #tpu.memory_space<vmem>>, vector<8x256xf32>
    %cst = arith.constant 0.000000e+00 : f32
    %1 = vector.broadcast %cst : f32 to vector<8x256xf32>
    %2 = arith.subf %1, %0 : vector<8x256xf32>
    %3 = math.exp %2 : vector<8x256xf32>
    %cst_1 = arith.constant 1.000000e+00 : f32
    %4 = vector.broadcast %cst_1 : f32 to vector<8x256xf32>
    %5 = arith.addf %4, %3 : vector<8x256xf32>
    %cst_2 = arith.constant 1.000000e+00 : f32
    %6 = vector.broadcast %cst_2 : f32 to vector<8x256xf32>
    %7 = arith.divf %6, %5 : vector<8x256xf32>
    %c0_3 = arith.constant 0 : index
    %c0_4 = arith.constant 0 : index
    %8 = vector.load %arg2[%c0_3, %c0_4] : memref<8x256xf32, #tpu.memory_space<vmem>>, vector<8x256xf32>
    tpu.vector_store %arg2[%c0_3, %c0_4], %7 {strides = array<i32>} : memref<8x256xf32, #tpu.memory_space<vmem>>, vector<8x256xf32>,
    return
  }
  func.func @transform_0(%arg0: i32) -> (i32, i32) {
    %c0_i32 = arith.constant 0 : i32
    %c0_i32_0 = arith.constant 0 : i32
    return %arg0, %c0_i32 : i32, i32
  }
  func.func @transform_1(%arg0: i32) -> (i32, i32) {
    %c0_i32 = arith.constant 0 : i32
    %c0_i32_0 = arith.constant 0 : i32
    return %arg0, %c0_i32 : i32, i32
  }
}

</mosaic_0001>

<llo_original>
// kernel: tpu_custom_call.1
$region0: #{tpu_custom_call.1}
  #allocation0 [shape = 'u32[]', space=smem, size = 0x4, offset = 0x4, fixed_abs, tag = 'smem constant byte address 0x4 - core index']
  #allocation1 [shape = 'u32[144,128]{1,0:T(1,128)}', space=vmem, size = 0x12000, scoped, tag = 'internal scratch']
  %s0 = inlined_call_operand.hbm [shape: f32[8,256], index: 0, kind: input, shape index: {}]
  %s1 = inlined_call_operand.hbm [shape: f32[8,256], index: 1, kind: output, shape index: {}]
  %s2 = sld [smem:[#allocation0]]
  $region18: #{tpu_custom_call.1} parent=0
    _
  %s4 = ssub.s32 1, %s2
  %s5 = scalar_select 0, %s4, %s2
  $region1: #{tpu_custom_call.1} parent=0
    #allocation2 [shape = 'u8[8192]{0}', space=vmem, size = 0x2000, scoped, tag = 'input window, operand 0, single buffered']
    #allocation3 [shape = 's32[1]{0}', space=sflag, size = 0x4, scoped, tag = 'scoped memory for tpu_custom_call.1']
    #allocation4 [shape = 's32[1]{0}', space=sflag, size = 0x4, scoped, tag = 'scoped memory for tpu_custom_call.1']
    #allocation5 [shape = 'u8[8192]{0}', space=vmem, size = 0x2000, scoped, tag = 'output window, operand 0, single buffered']
    %6 = vsyncpa [#allocation3], 0
    %7 = vsyncpa [#allocation4], 0
    // Predicated region
    $region2: #{tpu_custom_call.1} parent=1 // pred_check
      _
    $region3: #{tpu_custom_call.1} parent=1 // pred_check_branch
      %9 = sbr.rel (0) target = $region5
    $region4: #{tpu_custom_call.1} parent=1 // pred_region
      %s11 = ssub.s32 256, 256
      %12 = vsyncadd [#allocation3], %s11
      %s14 = sshll.u32 [#allocation2], 4
      %s15 = int_to_ptr.vmem [resolvable:$true] %s14
      %17 = dma.hbm_to_vmem [thread:$0]  %s0, 256, %s15, [#allocation3]
    $region5: #{tpu_custom_call.1} parent=1 // pred_fallthru
      _
    // Predicated region
    $region6: #{tpu_custom_call.1} parent=1 // pred_check
      _
    $region7: #{tpu_custom_call.1} parent=1 // pred_check_branch
      %19 = sbr.rel (0) target = $region9
    $region8: #{tpu_custom_call.1} parent=1 // pred_region
      %20 = dma.done [#allocation3], 256
    $region9: #{tpu_custom_call.1} parent=1 // pred_fallthru
      _
    %v21 = vld [vmem:[#allocation2] sm:$0xff]
    %v22 = vld [vmem:[#allocation2 + $0x8] sm:$0xff]
    %v23 = vsub.f32 0.0, %v21
    %v24 = vsub.f32 0.0, %v22
    %v25 = vmul.f32 %v23, 1.442695
    %v26 = vpow.pop %v25
    %v27 = vmul.f32 %v24, 1.442695
    %v28 = vpow.pop %v27
    %v29 = vadd.f32 %v26, 1.0
    %v30 = vadd.f32 %v28, 1.0
    %v31 = vrcp.pop %v29
    %v32 = vmul.f32 1.0, %v31
    %v33 = vrcp.pop %v30
    %v34 = vmul.f32 1.0, %v33
    %35 = vst [vmem:[#allocation5] sm:$0xff] %v32
    %36 = vst [vmem:[#allocation5 + $0x8] sm:$0xff] %v34
    // Predicated region
    $region10: #{tpu_custom_call.1} parent=1 // pred_check
      _
    $region11: #{tpu_custom_call.1} parent=1 // pred_check_branch
      %38 = sbr.rel (0) target = $region13
    $region12: #{tpu_custom_call.1} parent=1 // pred_region
      %s40 = ssub.s32 256, 256
      %41 = vsyncadd [#allocation4], %s40
      %s43 = sshll.u32 [#allocation5], 4
      %s44 = int_to_ptr.vmem [resolvable:$true] %s43
      %46 = dma.vmem_to_hbm [thread:$0]  %s44, 256, %s1, [#allocation4]
    $region13: #{tpu_custom_call.1} parent=1 // pred_fallthru
      _
    // Predicated region
    $region14: #{tpu_custom_call.1} parent=1 // pred_check
      _
    $region15: #{tpu_custom_call.1} parent=1 // pred_check_branch
      %48 = sbr.rel (0) target = $region17
    $region16: #{tpu_custom_call.1} parent=1 // pred_region
      %49 = dma.done [#allocation4], 256
    $region17: #{tpu_custom_call.1} parent=1 // pred_fallthru
      _
    %50 = vsyncpa [#allocation3], 1
    %51 = vsyncpa [#allocation4], 1

</llo_original>
